<compile_context>
chip_gen: v7x
topology: tpu7x:2x2x1
jax: 0.10.0
libtpu: 0.0.40
codegen_flags: <defaults>
</compile_context>

<pallas_src>
import math

import jax
import jax.numpy as jnp
from jax.experimental import pallas as pl
from jax.experimental.pallas import tpu as pltpu


# ----------------------------------------------------------------------------
# One-time setup (module "buffer" construction) — outside the per-call hot path.
# ----------------------------------------------------------------------------

def make_pe_table(d_model: int, max_len: int = 1000) -> jnp.ndarray:
    """Sinusoidal positional-encoding buffer, shape [1, max_len, d_model] (f32)."""
    position = jnp.arange(0, max_len, dtype=jnp.float32)[:, None]              # [max_len, 1]
    div_term = jnp.exp(
        jnp.arange(0, d_model, 2, dtype=jnp.float32) * (-math.log(10000.0) / d_model)
    )                                                                           # [ceil(d/2)]
    angles = position * div_term                                                # [max_len, ceil(d/2)]
    pe = jnp.zeros((max_len, d_model), dtype=jnp.float32)
    pe = pe.at[:, 0::2].set(jnp.sin(angles))
    # Guard odd d_model: the cos half only has floor(d/2) columns to fill.
    pe = pe.at[:, 1::2].set(jnp.cos(angles)[:, : d_model // 2])
    return pe[None, :, :]                                                       # [1, max_len, d_model]


def flatten_pe(pe: jnp.ndarray) -> jnp.ndarray:
    """One-time flatten of the pe buffer to a lane-dense [1, max_len*D] f32 slab."""
    _, max_len, d = pe.shape
    return pe.reshape(1, max_len * d)


# ----------------------------------------------------------------------------
# Kernel
# ----------------------------------------------------------------------------

def _pos_enc_kernel(x_ref, pe_ref, o_ref):
    # x_ref: (TB, TF), pe_ref: (1, TF) f32, o_ref: (TB, TF) — all VMEM tiles.
    # pe broadcasts over the batch (sublane) axis; only the tile is cast.
    o_ref[...] = (x_ref[...] + pe_ref[...].astype(x_ref.dtype)).astype(o_ref.dtype)


# ----------------------------------------------------------------------------
# Tiling heuristics
# ----------------------------------------------------------------------------

def _device_kind() -> str:
    try:
        return jax.devices()[0].device_kind.lower()
    except Exception:
        return ""


def _block_target_bytes() -> int:
    """Generation-dependent per-block byte target."""
    kind = _device_kind()
    if "v7" in kind:
        return 6 * 1024 * 1024   # 3.2 TB/s HBM: amortize the ~0.35us/step overhead
    if "v6" in kind:
        return 4 * 1024 * 1024   # fits 2x(x+out) well under the 32 MiB scoped default
    return 2 * 1024 * 1024       # v5e (16 MiB scoped default) & unknown: stay conservative


def _num_tensorcores() -> int:
    return 2 if "v7" in _device_kind() else 1


def _sublane(itemsize: int) -> int:
    return {4: 8, 2: 16, 1: 32}.get(itemsize, 8)


def _pick_tiles(B: int, F: int, itemsize: int, target: int):
    """Pick (batch_tile, flat_feature_tile); prefer full contiguous rows (tf = F)."""
    sublane = _sublane(itemsize)
    row_bytes = F * itemsize
    lane_aligned = (F % 128 == 0)

    # Shrink tf only when even a single sublane-group of full rows blows ~2x the
    # budget (and the lane axis is 128-aligned so a partial lane tile is legal).
    if lane_aligned and sublane * row_bytes > 2 * target:
        tf_cap = max(128, (target // max(1, sublane * itemsize)) // 128 * 128)
        tf_cap = min(F, tf_cap)
        # Prefer a 128-multiple divisor of F (edge blocks never need masking)...
        tf = None
        for cand in range(tf_cap, 127, -128):
            if F % cand == 0:
                tf = cand
                break
        # ...but don't give up more than half the cap just for divisibility.
        if tf is None or tf < tf_cap // 2:
            tf = tf_cap
        tb = B if B <= sublane else sublane
        return tb, tf

    # Full-row blocks: one long contiguous HBM burst per block; tile batch only.
    tf = F
    blk_rows = max(1, (target // max(1, row_bytes)) // sublane) * sublane
    tb = B if B <= blk_rows else blk_rows      # multiple of sublane when < B
    return tb, tf


def _ensure_min_two_blocks(B: int, F: int, tb: int, tf: int, sublane: int):
    """On multi-TC chips, split one axis so both TensorCores get work."""
    if pl.cdiv(F, tf) * pl.cdiv(B, tb) >= 2:
        return tb, tf
    if B >= 2 * sublane:
        half = max(sublane, ((B // 2) // sublane) * sublane)
        if pl.cdiv(B, half) >= 2:
            return half, tf
    if F % 128 == 0 and F >= 256 and tf == F:
        half_f = max(128, ((F // 2) // 128) * 128)
        if pl.cdiv(F, half_f) >= 2:
            return tb, half_f
    return tb, tf   # problem too tiny to split legally


# ----------------------------------------------------------------------------
# Wrapper
# ----------------------------------------------------------------------------

def positional_encoding(x: jnp.ndarray, pe_flat: jnp.ndarray, *, donate_x: bool = False) -> jnp.ndarray:
    """x: [B, S, D]; pe_flat: [1, max_len*D] f32 (from flatten_pe, prepared once).

    Returns x + pe[:, :S, :] in x.dtype (same math as the PyTorch forward).
    """
    B, S, D = x.shape
    total = pe_flat.shape[1]
    if total % D != 0:
        raise ValueError(f"pe_flat width {total} is not a multiple of D={D}")
    max_len = total // D
    if S > max_len:
        raise ValueError(f"sequence length {S} exceeds positional-encoding max_len {max_len}")

    dtype = x.dtype
    itemsize = jnp.dtype(dtype).itemsize
    sublane = _sublane(itemsize)
    F = S * D

    target = _block_target_bytes()
    tb, tf = _pick_tiles(B, F, itemsize, target)
    if _num_tensorcores() >= 2:
        tb, tf = _ensure_min_two_blocks(B, F, tb, tf, sublane)

    # Lane-dense 2D views. Flat index s*D + d is identical for x and pe, so on
    # the 128-aligned path the full pe table is windowed purely via BlockSpec.
    x2 = x.reshape(B, F)
    if F % 128 == 0:
        pe2 = pe_flat
    else:
        # Non-lane-aligned F: block must equal full array dims, so present the
        # exact [1, F] slab (reads only F elements — same order as x traffic).
        pe2 = pe_flat[:, :F]
        tf = F

    grid = (pl.cdiv(F, tf), pl.cdiv(B, tb))   # batch innermost: pe tile constant along it

    # Explicit VMEM budget from the chosen tiles (x + out double buffered in
    # x.dtype, pe double buffered in f32), with headroom; clamped to stay safe
    # on every generation (<< 64 MiB physical on v7x, << 128 MiB elsewhere).
    x_blk = tb * tf * itemsize
    pe_blk = tf * jnp.dtype(pe_flat.dtype).itemsize
    needed = 2 * x_blk + 2 * x_blk + 2 * pe_blk
    vmem_limit = int(min(56 << 20, max(32 << 20, int(needed * 1.5) + (4 << 20))))

    out2 = pl.pallas_call(
        _pos_enc_kernel,
        out_shape=jax.ShapeDtypeStruct((B, F), dtype),
        grid_spec=pltpu.PrefetchScalarGridSpec(
            num_scalar_prefetch=0,
            grid=grid,
            in_specs=[
                pl.BlockSpec((tb, tf), lambda f, b: (b, f)),   # x tile
                pl.BlockSpec((1, tf), lambda f, b: (0, f)),    # pe tile (reused along inner b axis)
            ],
            out_specs=pl.BlockSpec((tb, tf), lambda f, b: (b, f)),
        ),
        compiler_params=pltpu.CompilerParams(
            dimension_semantics=("parallel", "parallel"),
            vmem_limit_bytes=vmem_limit,
        ),
        # Optionally reuse x's HBM buffer for the output when the caller no longer needs x.
        input_output_aliases=({0: 0} if donate_x else {}),
    )(x2, pe2)

    return out2.reshape(B, S, D)


if __name__ == "__main__":
    B, S, D = 2, 8, 32
    MAX_LEN = 1000

    key = jax.random.PRNGKey(0)
    x = jax.random.normal(key, (B, S, D), dtype=jnp.float32)

    pe = make_pe_table(D, MAX_LEN)        # [1, max_len, D] f32 — the module buffer
    pe_flat = flatten_pe(pe)              # one-time prep, hoisted out of the hot path

    out = jax.block_until_ready(positional_encoding(x, pe_flat))

    # Reference check (pure JAX, same math as the PyTorch forward).
    ref = x + pe[:, :S, :].astype(x.dtype)
    assert out.shape == (B, S, D)
    assert jnp.allclose(out, ref, atol=1e-6, rtol=1e-6), "mismatch vs reference"

    print("KERNEL_OK")
</pallas_src>

<mosaic_0001>
module attributes {stable_mosaic.version = 11 : i64} {
  func.func @_pos_enc_kernel(%arg0: i32, %arg1: i32, %arg2: memref<2x256xf32, #tpu.memory_space<vmem>>, %arg3: memref<1x256xf32, #tpu.memory_space<vmem>>, %arg4: memref<2x256xf32, #tpu.memory_space<vmem>>) attributes {dimension_semantics = [#tpu.dimension_semantics<parallel>, #tpu.dimension_semantics<parallel>], iteration_bounds = array<i64: 1, 1>, scalar_prefetch = 0 : i64, scratch_operands = 0 : i64, tpu.core_type = #tpu.core_type<tc>, window_params = [{transform_indices = @transform_0, window_bounds = array<i64: 2, 256>}, {transform_indices = @transform_1, window_bounds = array<i64: 1, 256>}, {transform_indices = @transform_2, window_bounds = array<i64: 2, 256>}]} {
    %c0 = arith.constant 0 : index
    %c0_0 = arith.constant 0 : index
    %0 = vector.load %arg2[%c0, %c0_0] : memref<2x256xf32, #tpu.memory_space<vmem>>, vector<2x256xf32>
    %c0_1 = arith.constant 0 : index
    %c0_2 = arith.constant 0 : index
    %1 = vector.load %arg3[%c0_1, %c0_2] : memref<1x256xf32, #tpu.memory_space<vmem>>, vector<1x256xf32>
    %2 = vector.broadcast %1 : vector<1x256xf32> to vector<2x256xf32>
    %3 = arith.addf %0, %2 : vector<2x256xf32>
    %c0_3 = arith.constant 0 : index
    %c0_4 = arith.constant 0 : index
    %4 = vector.load %arg4[%c0_3, %c0_4] : memref<2x256xf32, #tpu.memory_space<vmem>>, vector<2x256xf32>
    tpu.vector_store %arg4[%c0_3, %c0_4], %3 {strides = array<i32>} : memref<2x256xf32, #tpu.memory_space<vmem>>, vector<2x256xf32>,
    return
  }
  func.func @transform_0(%arg0: i32, %arg1: i32) -> (i32, i32) {
    %c0_i32 = arith.constant 0 : i32
    return %arg1, %arg0 : i32, i32
  }
  func.func @transform_1(%arg0: i32, %arg1: i32) -> (i32, i32) {
    %c0_i32 = arith.constant 0 : i32
    %c0_i32_0 = arith.constant 0 : i32
    return %c0_i32, %arg0 : i32, i32
  }
  func.func @transform_2(%arg0: i32, %arg1: i32) -> (i32, i32) {
    %c0_i32 = arith.constant 0 : i32
    return %arg1, %arg0 : i32, i32
  }
}

</mosaic_0001>

<llo_original>
// kernel: tpu_custom_call.1
$region0: #{tpu_custom_call.1}
  #allocation0 [shape = 'u32[]', space=smem, size = 0x4, offset = 0x4, fixed_abs, tag = 'smem constant byte address 0x4 - core index']
  #allocation1 [shape = 'u32[144,128]{1,0:T(1,128)}', space=vmem, size = 0x12000, scoped, tag = 'internal scratch']
  %s0 = inlined_call_operand.hbm [shape: f32[2,256], index: 0, kind: input, shape index: {}]
  %s1 = inlined_call_operand.hbm [shape: f32[1,32000], index: 1, kind: input, shape index: {}]
  %s2 = inlined_call_operand.hbm [shape: f32[2,256], index: 2, kind: output, shape index: {}]
  %s3 = sld [smem:[#allocation0]]
  $region26: #{tpu_custom_call.1} parent=0
    _
  %s5 = ssub.s32 1, %s3
  %s6 = scalar_select 0, %s5, %s3
  $region1: #{tpu_custom_call.1} parent=0
    #allocation2 [shape = 'u8[2048]{0}', space=vmem, size = 0x800, scoped, tag = 'input window, operand 0, single buffered']
    #allocation3 [shape = 's32[1]{0}', space=sflag, size = 0x4, scoped, tag = 'scoped memory for tpu_custom_call.1']
    #allocation4 [shape = 's32[1]{0}', space=sflag, size = 0x4, scoped, tag = 'scoped memory for tpu_custom_call.1']
    #allocation5 [shape = 'u8[1024]{0}', space=vmem, size = 0x400, scoped, tag = 'input window, operand 1, single buffered']
    #allocation6 [shape = 's32[1]{0}', space=sflag, size = 0x4, scoped, tag = 'scoped memory for tpu_custom_call.1']
    #allocation7 [shape = 'u8[2048]{0}', space=vmem, size = 0x800, scoped, tag = 'output window, operand 0, single buffered']
    %7 = vsyncpa [#allocation3], 0
    %8 = vsyncpa [#allocation6], 0
    %9 = vsyncpa [#allocation4], 0
    // Predicated region
    $region2: #{tpu_custom_call.1} parent=1 // pred_check
      _
    $region3: #{tpu_custom_call.1} parent=1 // pred_check_branch
      %11 = sbr.rel (0) target = $region5
    $region4: #{tpu_custom_call.1} parent=1 // pred_region
      %s13 = ssub.s32 64, 64
      %14 = vsyncadd [#allocation3], %s13
      %s16 = sshll.u32 [#allocation2], 4
      %s17 = int_to_ptr.vmem [resolvable:$true] %s16
      %19 = dma.hbm_to_vmem [thread:$0]  %s0, 64, %s17, [#allocation3]
    $region5: #{tpu_custom_call.1} parent=1 // pred_fallthru
      _
    // Predicated region
    $region6: #{tpu_custom_call.1} parent=1 // pred_check
      _
    $region7: #{tpu_custom_call.1} parent=1 // pred_check_branch
      %21 = sbr.rel (0) target = $region9
    $region8: #{tpu_custom_call.1} parent=1 // pred_region
      %s23 = ssub.s32 32, 32
      %24 = vsyncadd [#allocation6], %s23
      %s26 = sshll.u32 [#allocation5], 4
      %s27 = int_to_ptr.vmem [resolvable:$true] %s26
      %29 = dma.hbm_to_vmem [thread:$0]  %s1, 32, %s27, [#allocation6]
    $region9: #{tpu_custom_call.1} parent=1 // pred_fallthru
      _
    // Predicated region
    $region10: #{tpu_custom_call.1} parent=1 // pred_check
      _
    $region11: #{tpu_custom_call.1} parent=1 // pred_check_branch
      %31 = sbr.rel (0) target = $region13
    $region12: #{tpu_custom_call.1} parent=1 // pred_region
      %32 = dma.done [#allocation3], 64
    $region13: #{tpu_custom_call.1} parent=1 // pred_fallthru
      _
    // Predicated region
    $region14: #{tpu_custom_call.1} parent=1 // pred_check
      _
    $region15: #{tpu_custom_call.1} parent=1 // pred_check_branch
      %34 = sbr.rel (0) target = $region17
    $region16: #{tpu_custom_call.1} parent=1 // pred_region
      %35 = dma.done [#allocation6], 32
    $region17: #{tpu_custom_call.1} parent=1 // pred_fallthru
      _
    %v36 = vld [vmem:[#allocation2] sm:$0xf]
    %v37 = vld [vmem:[#allocation5] sm:$0x3]
    %v39 = vlaneseq
    %v40 = vshrl.u32 %v39, 7
    %v41 = vsub.s32 0, %v40
    %v42 = vrot.slane %v37, %v41
    %v43 = vlaneseq
    %v44 = vshrl.u32 %v43, 7
    %v45 = vsub.s32 1, %v44
    %v46 = vrot.slane %v37, %v45
    %v47 = vcombine.low %v42, %v46
    %v49 = vunpack.c.l.s4 1983009808
    %v50 = vunpack.c.0.s8 %v49
    %v51 = vlaneseq
    %v52 = vshrl.u32 %v51, 7
    %v53 = vsub.s32 %v50, %v52
    %v54 = vrot.slane %v47, %v53
    %v56 = vadd.f32 %v36, %v54
    %57 = vst [vmem:[#allocation7] sm:$0xf] %v56
    // Predicated region
    $region18: #{tpu_custom_call.1} parent=1 // pred_check
      _
    $region19: #{tpu_custom_call.1} parent=1 // pred_check_branch
      %59 = sbr.rel (0) target = $region21
    $region20: #{tpu_custom_call.1} parent=1 // pred_region
      %s61 = ssub.s32 64, 64
      %62 = vsyncadd [#allocation4], %s61
      %s64 = sshll.u32 [#allocation7], 4
      %s65 = int_to_ptr.vmem [resolvable:$true] %s64
      %67 = dma.vmem_to_hbm [thread:$0]  %s65, 64, %s2, [#allocation4]
    $region21: #{tpu_custom_call.1} parent=1 // pred_fallthru
      _
    // Predicated region
    $region22: #{tpu_custom_call.1} parent=1 // pred_check
      _
    $region23: #{tpu_custom_call.1} parent=1 // pred_check_branch
      %69 = sbr.rel (0) target = $region25
    $region24: #{tpu_custom_call.1} parent=1 // pred_region
      %70 = dma.done [#allocation4], 64
    $region25: #{tpu_custom_call.1} parent=1 // pred_fallthru
      _
    %71 = vsyncpa [#allocation3], 1
    %72 = vsyncpa [#allocation6], 1
    %73 = vsyncpa [#allocation4], 1

</llo_original>
